<compile_context>
chip_gen: v7x
topology: tpu7x:2x2x1
jax: 0.10.0
libtpu: 0.0.40
codegen_flags: <defaults>
</compile_context>

<pallas_src>
import functools

import jax
import jax.numpy as jnp
import numpy as np
from jax.experimental import pallas as pl
from jax.experimental.pallas import tpu as pltpu


def _round_up(x, m):
    return ((x + m - 1) // m) * m


def _scatter_mean_kernel(hit_ref, idx_ref, feat_ref, out_ref, acc_ref, cnt_ref,
                         *, ones_col, mxu_dtype):
    """Grid = (dest tiles [parallel], group chunks [reduction])."""
    i = pl.program_id(0)
    k = pl.program_id(1)
    n_k = pl.num_programs(1)

    @pl.when(k == 0)
    def _():
        acc_ref[...] = jnp.zeros_like(acc_ref)
        if ones_col is None:
            cnt_ref[...] = jnp.zeros_like(cnt_ref)

    td = out_ref.shape[0]
    tg = feat_ref.shape[0]
    n_m = idx_ref.shape[0]          # neighbours per group (static, small)

    # Skip (dest tile, group chunk) pairs that receive no scatter contribution
    # (hit bitmap precomputed in the wrapper, scalar-prefetched into SMEM).
    @pl.when(hit_ref[i * n_k + k] > 0)
    def _():
        d0 = i * td
        dest_ids = d0 + jax.lax.broadcasted_iota(jnp.int32, (td, 1), 0)
        idx_blk = idx_ref[...]                                     # (M, tg)

        # Per-group scatter counts: cnt[s, j] = #{m : idx[j, m] == d0 + s}.
        # Accumulate masks as int32, convert to the MXU dtype once.
        cnt_i = jnp.zeros((td, tg), jnp.int32)
        for m in range(n_m):        # static unrolled loop, 2-D intermediates
            cnt_i = cnt_i + (idx_blk[m][None, :] == dest_ids).astype(jnp.int32)
        cnt = cnt_i.astype(mxu_dtype)

        # Single bf16 MXU matmul with f32 accumulation; when the feature slab
        # carries a ones lane (ones_col) it also yields per-dest counts.
        acc_ref[...] += jnp.dot(cnt, feat_ref[...],
                                preferred_element_type=jnp.float32)
        if ones_col is None:
            # C already lane-aligned: counts via XLU lane-reduce (exact,
            # integer-valued f32 below 2^24).
            cnt_ref[...] += jnp.sum(cnt_i.astype(jnp.float32), axis=-1,
                                    keepdims=True)

    @pl.when(k == n_k - 1)
    def _():
        if ones_col is None:
            counts = cnt_ref[...]
        else:
            counts = acc_ref[:, ones_col:ones_col + 1]
        mean = acc_ref[...] / jnp.maximum(counts, 1.0)
        out_ref[...] = jnp.where(counts > 0, mean, 0.0).astype(out_ref.dtype)


def upsample_pallas(center_features, ori_idx, original_num_points,
                    *, compute_dtype=jnp.bfloat16):
    """Equivalent of M3DM Upsample.forward.

    center_features: [B, G, C] float
    ori_idx:         [B, G, M] int (flat indices into the [B*N] output buffer,
                     exactly as the PyTorch module treats them)
    returns:         [B, N, C] with N = original_num_points
    """
    B, G, C = center_features.shape
    _, _, M = ori_idx.shape
    Gtot = B * G
    D = B * original_num_points

    # Channel padding: a lane multiple.  If C is NOT already lane-aligned the
    # spare padding column C carries the "ones" lane, so the same matmul
    # produces sums AND counts at zero extra width; otherwise no ones lane.
    Cp = max(128, _round_up(C, 128))
    ones_col = C if (C % 128 != 0) else None

    out_dtype = center_features.dtype
    out_isz = jnp.dtype(out_dtype).itemsize
    feat_isz = jnp.dtype(compute_dtype).itemsize

    # ---- generation-keyed VMEM budgeting (128 MiB v5e/v6e, 64 MiB v7x) ------
    try:
        vmem_cap = int(pltpu.get_tpu_info().vmem_capacity_bytes)
    except Exception:
        vmem_cap = 64 * 1024 * 1024
    budget = min(int(vmem_cap * 0.55), 72 * 1024 * 1024)

    td_cap = max(128, _round_up(D, 128))
    tg_cap = max(128, _round_up(Gtot, 128))

    def footprint(td_, tg_):
        return (td_ * Cp * 4                 # f32 accumulator scratch
                + 2 * td_ * Cp * out_isz     # double-buffered output block
                + 2 * tg_ * Cp * feat_isz    # double-buffered feature chunk
                + 2 * M * tg_ * 4            # double-buffered index chunk
                + td_ * tg_ * 8)             # cnt temporaries (i32 + mxu dtype)

    td, tg = 128, 128
    for td_c in (1024, 512, 256, 128):       # big dest tile = less re-stream
        td_c = min(td_c, td_cap)
        found = False
        for tg_c in (8192, 4096, 2048, 1024, 512, 256, 128):
            tg_c = min(tg_c, tg_cap)
            if footprint(td_c, tg_c) <= budget:
                td, tg, found = td_c, tg_c, True
                break
        if found:
            break

    # Keep at least 2 dest tiles when there is enough work, so the "parallel"
    # axis can split across v7x's two TensorCores (no-op on 1-TC v5e/v6e).
    if D > 256:
        td = min(td, max(128, _round_up(-(-D // 2), 128)))

    d_pad = _round_up(D, td)
    g_pad = _round_up(Gtot, tg)
    n_i = d_pad // td
    n_k = g_pad // tg

    # ---- host-side slabs (single concat/pad, no .at[].set passes) -----------
    feat = center_features.reshape(Gtot, C).astype(compute_dtype)
    cols = [feat]
    if ones_col is not None:
        cols.append(jnp.ones((Gtot, 1), compute_dtype))
    pad_c = Cp - C - (1 if ones_col is not None else 0)
    if pad_c > 0:
        cols.append(jnp.zeros((Gtot, pad_c), compute_dtype))
    feat_aug = jnp.concatenate(cols, axis=1) if len(cols) > 1 else feat
    if g_pad > Gtot:
        feat_aug = jnp.pad(feat_aug, ((0, g_pad - Gtot), (0, 0)))

    # Indices as [M, g_pad]: long (group) axis on lanes; padded groups = -1
    # (never matches a destination row).
    idx = ori_idx.reshape(Gtot, M).astype(jnp.int32).T
    idx2d = jnp.pad(idx, ((0, 0), (0, g_pad - Gtot)), constant_values=-1)

    # ---- per-(dest tile, group chunk) hit bitmap for tile skipping ----------
    dest_tile = jnp.where(idx2d >= 0, idx2d // td, n_i)       # OOB -> dropped
    chunk_id = jnp.broadcast_to((jnp.arange(g_pad) // tg)[None, :], idx2d.shape)
    hit = (jnp.zeros((n_i, n_k), jnp.int32)
           .at[dest_tile.reshape(-1), chunk_id.reshape(-1)]
           .max(jnp.ones(idx2d.size, jnp.int32), mode="drop")
           .reshape(-1))

    fp = footprint(td, tg)
    vmem_limit = int(max(32 * 1024 * 1024,
                         min(fp + 16 * 1024 * 1024, int(vmem_cap * 0.85))))

    out = pl.pallas_call(
        functools.partial(_scatter_mean_kernel, ones_col=ones_col,
                          mxu_dtype=compute_dtype),
        out_shape=jax.ShapeDtypeStruct((d_pad, Cp), out_dtype),
        grid_spec=pltpu.PrefetchScalarGridSpec(
            num_scalar_prefetch=1,
            grid=(n_i, n_k),
            in_specs=[
                # Index chunk (M, tg): constant block row, varies only with k
                # -> resident in VMEM when there is a single group chunk.
                pl.BlockSpec((M, tg), lambda i, k, hit: (0, k)),
                # Feature(+ones) chunk (tg, Cp), bf16.
                pl.BlockSpec((tg, Cp), lambda i, k, hit: (k, 0)),
            ],
            out_specs=pl.BlockSpec((td, Cp), lambda i, k, hit: (i, 0)),
            scratch_shapes=[pltpu.VMEM((td, Cp), jnp.float32),
                            pltpu.VMEM((td, 1), jnp.float32)],
        ),
        compiler_params=pltpu.CompilerParams(
            dimension_semantics=("parallel", "arbitrary"),
            vmem_limit_bytes=vmem_limit),
    )(hit, idx2d, feat_aug)

    return out[:D, :C].reshape(B, original_num_points, C)


def _reference(center_features, ori_idx, original_num_points):
    """Pure-JAX reference of the module's scatter_mean semantics."""
    B, G, C = center_features.shape
    M = ori_idx.shape[2]
    D = B * original_num_points
    feat = jnp.repeat(center_features.reshape(B * G, C), M, axis=0)
    idx = ori_idx.reshape(-1)
    sums = jax.ops.segment_sum(feat, idx, num_segments=D)
    cnts = jax.ops.segment_sum(jnp.ones((feat.shape[0],), feat.dtype), idx,
                               num_segments=D)
    mean = sums / jnp.maximum(cnts, 1.0)[:, None]
    out = jnp.where(cnts[:, None] > 0, mean, 0.0)
    return out.reshape(B, original_num_points, C)


if __name__ == "__main__":
    # The Upsample module has no parameters (empty __init__), so no weights.
    key = jax.random.PRNGKey(0)
    # Case 1 exercises the "ones lane in padding" path (C % 128 != 0);
    # Case 2 exercises the XLU-count path (C % 128 == 0).
    for (B, G, M, C, N) in [(2, 8, 4, 32, 64), (2, 8, 4, 128, 64)]:
        key, k_feat, k_idx = jax.random.split(key, 3)
        center_features = jax.random.normal(k_feat, (B, G, C), dtype=jnp.float32)
        # The PyTorch module scatters into a flat [B*N] buffer using the raw
        # indices (no per-batch offset added), so indices span the flat range.
        ori_idx = jax.random.randint(k_idx, (B, G, M), 0, B * N, dtype=jnp.int32)

        out = jax.block_until_ready(upsample_pallas(center_features, ori_idx, N))
        assert out.shape == (B, N, C)

        # Features travel as bf16 (native MXU dtype): compare tightly against
        # a bf16-cast reference, and loosely against the full-f32 reference.
        ref_bf16 = _reference(
            center_features.astype(jnp.bfloat16).astype(jnp.float32), ori_idx, N)
        np.testing.assert_allclose(np.asarray(out), np.asarray(ref_bf16),
                                   rtol=2e-3, atol=2e-3)
        ref_f32 = _reference(center_features, ori_idx, N)
        np.testing.assert_allclose(np.asarray(out), np.asarray(ref_f32),
                                   rtol=5e-2, atol=5e-2)
    print("KERNEL_OK")
</pallas_src>

<mosaic_0001>
module attributes {stable_mosaic.version = 11 : i64} {
  func.func @_scatter_mean_kernel(%arg0: i32, %arg1: i32, %arg2: memref<1xi32, #tpu.memory_space<smem>>, %arg3: memref<4x128xi32, #tpu.memory_space<vmem>>, %arg4: memref<128x128xbf16, #tpu.memory_space<vmem>>, %arg5: memref<128x128xf32, #tpu.memory_space<vmem>>, %arg6: memref<128x128xf32, #tpu.memory_space<vmem>>, %arg7: memref<128x1xf32, #tpu.memory_space<vmem>>) attributes {dimension_semantics = [#tpu.dimension_semantics<parallel>, #tpu.dimension_semantics<arbitrary>], iteration_bounds = array<i64: 1, 1>, scalar_prefetch = 1 : i64, scratch_operands = 2 : i64, tpu.core_type = #tpu.core_type<tc>, window_params = [{transform_indices = @transform_0, window_bounds = array<i64: 4, 128>}, {transform_indices = @transform_1, window_bounds = array<i64: 128, 128>}, {transform_indices = @transform_2, window_bounds = array<i64: 128, 128>}]} {
    %c0_i32 = arith.constant 0 : i32
    %0 = arith.cmpi eq, %arg1, %c0_i32 : i32
    %1 = arith.extui %0 : i1 to i32
    %c0_i32_0 = arith.constant 0 : i32
    %2 = arith.cmpi ne, %1, %c0_i32_0 : i32
    scf.if %2 {
      %cst = arith.constant 0.000000e+00 : f32
      %13 = vector.broadcast %cst : f32 to vector<128x128xf32>
      %c0 = arith.constant 0 : index
      %c0_5 = arith.constant 0 : index
      %14 = vector.load %arg6[%c0, %c0_5] : memref<128x128xf32, #tpu.memory_space<vmem>>, vector<128x128xf32>
      tpu.vector_store %arg6[%c0, %c0_5], %13 {strides = array<i32>} : memref<128x128xf32, #tpu.memory_space<vmem>>, vector<128x128xf32>,
    } else {
    }
    %c1_i32 = arith.constant 1 : i32
    %3 = arith.muli %arg0, %c1_i32 : i32
    %4 = arith.addi %3, %arg1 : i32
    %5 = arith.index_cast %4 : i32 to index
    %6 = memref.load %arg2[%5] : memref<1xi32, #tpu.memory_space<smem>>
    %c0_i32_1 = arith.constant 0 : i32
    %7 = arith.cmpi sgt, %6, %c0_i32_1 : i32
    %8 = arith.extui %7 : i1 to i32
    %c0_i32_2 = arith.constant 0 : i32
    %9 = arith.cmpi ne, %8, %c0_i32_2 : i32
    scf.if %9 {
      %c128_i32 = arith.constant 128 : i32
      %13 = arith.muli %arg0, %c128_i32 : i32
      %14 = tpu.iota {dimensions = array<i32: 0>} : vector<128x1xi32>
      %15 = vector.broadcast %13 : i32 to vector<128x1xi32>
      %16 = arith.addi %15, %14 : vector<128x1xi32>
      %c0 = arith.constant 0 : index
      %c0_5 = arith.constant 0 : index
      %17 = vector.load %arg3[%c0, %c0_5] : memref<4x128xi32, #tpu.memory_space<vmem>>, vector<4x128xi32>
      %c0_i32_6 = arith.constant 0 : i32
      %18 = vector.broadcast %c0_i32_6 : i32 to vector<128x128xi32>
      %19 = vector.extract_strided_slice %17 {offsets = [0, 0], sizes = [1, 128], strides = [1, 1]} : vector<4x128xi32> to vector<1x128xi32>
      %20 = vector.shape_cast %19 : vector<1x128xi32> to vector<128xi32>
      %21 = vector.shape_cast %20 : vector<128xi32> to vector<1x128xi32>
      %22 = vector.broadcast %21 : vector<1x128xi32> to vector<128x128xi32>
      %23 = vector.broadcast %16 : vector<128x1xi32> to vector<128x128xi32>
      %24 = arith.cmpi eq, %22, %23 : vector<128x128xi32>
      %25 = arith.extui %24 : vector<128x128xi1> to vector<128x128xi32>
      %26 = arith.addi %18, %25 : vector<128x128xi32>
      %27 = vector.extract_strided_slice %17 {offsets = [1, 0], sizes = [1, 128], strides = [1, 1]} : vector<4x128xi32> to vector<1x128xi32>
      %28 = vector.shape_cast %27 : vector<1x128xi32> to vector<128xi32>
      %29 = vector.shape_cast %28 : vector<128xi32> to vector<1x128xi32>
      %30 = vector.broadcast %29 : vector<1x128xi32> to vector<128x128xi32>
      %31 = vector.broadcast %16 : vector<128x1xi32> to vector<128x128xi32>
      %32 = arith.cmpi eq, %30, %31 : vector<128x128xi32>
      %33 = arith.extui %32 : vector<128x128xi1> to vector<128x128xi32>
      %34 = arith.addi %26, %33 : vector<128x128xi32>
      %35 = vector.extract_strided_slice %17 {offsets = [2, 0], sizes = [1, 128], strides = [1, 1]} : vector<4x128xi32> to vector<1x128xi32>
      %36 = vector.shape_cast %35 : vector<1x128xi32> to vector<128xi32>
      %37 = vector.shape_cast %36 : vector<128xi32> to vector<1x128xi32>
      %38 = vector.broadcast %37 : vector<1x128xi32> to vector<128x128xi32>
      %39 = vector.broadcast %16 : vector<128x1xi32> to vector<128x128xi32>
      %40 = arith.cmpi eq, %38, %39 : vector<128x128xi32>
      %41 = arith.extui %40 : vector<128x128xi1> to vector<128x128xi32>
      %42 = arith.addi %34, %41 : vector<128x128xi32>
      %43 = vector.extract_strided_slice %17 {offsets = [3, 0], sizes = [1, 128], strides = [1, 1]} : vector<4x128xi32> to vector<1x128xi32>
      %44 = vector.shape_cast %43 : vector<1x128xi32> to vector<128xi32>
      %45 = vector.shape_cast %44 : vector<128xi32> to vector<1x128xi32>
      %46 = vector.broadcast %45 : vector<1x128xi32> to vector<128x128xi32>
      %47 = vector.broadcast %16 : vector<128x1xi32> to vector<128x128xi32>
      %48 = arith.cmpi eq, %46, %47 : vector<128x128xi32>
      %49 = arith.extui %48 : vector<128x128xi1> to vector<128x128xi32>
      %50 = arith.addi %42, %49 : vector<128x128xi32>
      %51 = arith.sitofp %50 : vector<128x128xi32> to vector<128x128xbf16>
      %c0_7 = arith.constant 0 : index
      %c0_8 = arith.constant 0 : index
      %52 = vector.load %arg6[%c0_7, %c0_8] : memref<128x128xf32, #tpu.memory_space<vmem>>, vector<128x128xf32>
      %c0_9 = arith.constant 0 : index
      %c0_10 = arith.constant 0 : index
      %53 = vector.load %arg4[%c0_9, %c0_10] : memref<128x128xbf16, #tpu.memory_space<vmem>>, vector<128x128xbf16>
      %cst = arith.constant dense<0.000000e+00> : vector<128x128xf32>
      %54 = tpu.matmul %51, %53, %cst {dimension_numbers = #tpu.dot_dimension_numbers<[1], [0], [0], [1], [0, 0, 1, 1], [], []>} : vector<128x128xbf16>, vector<128x128xbf16>, vector<128x128xf32> -> vector<128x128xf32>
      %55 = arith.addf %52, %54 : vector<128x128xf32>
      %c0_11 = arith.constant 0 : index
      %c0_12 = arith.constant 0 : index
      %56 = vector.load %arg6[%c0_11, %c0_12] : memref<128x128xf32, #tpu.memory_space<vmem>>, vector<128x128xf32>
      tpu.vector_store %arg6[%c0_11, %c0_12], %55 {strides = array<i32>} : memref<128x128xf32, #tpu.memory_space<vmem>>, vector<128x128xf32>,
    } else {
    }
    %c0_i32_3 = arith.constant 0 : i32
    %10 = arith.cmpi eq, %arg1, %c0_i32_3 : i32
    %11 = arith.extui %10 : i1 to i32
    %c0_i32_4 = arith.constant 0 : i32
    %12 = arith.cmpi ne, %11, %c0_i32_4 : i32
    scf.if %12 {
      %c0 = arith.constant 0 : index
      %c32 = arith.constant 32 : index
      %13 = vector.load %arg6[%c0, %c32] : memref<128x128xf32, #tpu.memory_space<vmem>>, vector<128x1xf32>
      %c0_5 = arith.constant 0 : index
      %c0_6 = arith.constant 0 : index
      %14 = vector.load %arg6[%c0_5, %c0_6] : memref<128x128xf32, #tpu.memory_space<vmem>>, vector<128x128xf32>
      %cst = arith.constant 1.000000e+00 : f32
      %15 = vector.broadcast %cst : f32 to vector<128x1xf32>
      %16 = arith.maximumf %13, %15 : vector<128x1xf32>
      %17 = vector.broadcast %16 : vector<128x1xf32> to vector<128x128xf32>
      %18 = arith.divf %14, %17 : vector<128x128xf32>
      %cst_7 = arith.constant 0.000000e+00 : f32
      %19 = vector.broadcast %cst_7 : f32 to vector<128x1xf32>
      %20 = arith.cmpf ogt, %13, %19 : vector<128x1xf32>
      %cst_8 = arith.constant 0.000000e+00 : f32
      %21 = vector.shape_cast %20 : vector<128x1xi1> to vector<128x1xi1>
      %22 = vector.broadcast %21 : vector<128x1xi1> to vector<128x128xi1>
      %23 = vector.broadcast %cst_8 : f32 to vector<128x128xf32>
      %24 = arith.select %22, %18, %23 : vector<128x128xi1>, vector<128x128xf32>
      %c0_9 = arith.constant 0 : index
      %c0_10 = arith.constant 0 : index
      %25 = vector.load %arg5[%c0_9, %c0_10] : memref<128x128xf32, #tpu.memory_space<vmem>>, vector<128x128xf32>
      tpu.vector_store %arg5[%c0_9, %c0_10], %24 {strides = array<i32>} : memref<128x128xf32, #tpu.memory_space<vmem>>, vector<128x128xf32>,
    } else {
    }
    return
  }
  func.func @transform_0(%arg0: i32, %arg1: i32, %arg2: memref<1xi32, #tpu.memory_space<smem>>) -> (i32, i32) {
    %c0_i32 = arith.constant 0 : i32
    %c0_i32_0 = arith.constant 0 : i32
    return %c0_i32, %arg1 : i32, i32
  }
  func.func @transform_1(%arg0: i32, %arg1: i32, %arg2: memref<1xi32, #tpu.memory_space<smem>>) -> (i32, i32) {
    %c0_i32 = arith.constant 0 : i32
    %c0_i32_0 = arith.constant 0 : i32
    return %arg1, %c0_i32 : i32, i32
  }
  func.func @transform_2(%arg0: i32, %arg1: i32, %arg2: memref<1xi32, #tpu.memory_space<smem>>) -> (i32, i32) {
    %c0_i32 = arith.constant 0 : i32
    %c0_i32_0 = arith.constant 0 : i32
    return %arg0, %c0_i32 : i32, i32
  }
}

</mosaic_0001>

<llo_original>
// kernel: tpu_custom_call.1
$region0: #{tpu_custom_call.1}
  #allocation0 [shape = 'u32[]', space=smem, size = 0x4, offset = 0x4, fixed_abs, tag = 'smem constant byte address 0x4 - core index']
  #allocation1 [shape = 'u32[144,128]{1,0:T(1,128)}', space=vmem, size = 0x12000, scoped, tag = 'internal scratch']
  #allocation2 [shape = 'f32[128,128]{1,0:T(8,128)}', space=vmem, size = 0x10000, scoped, tag = 'scratch operand']
  #allocation3 [shape = 'f32[128,1]{1,0:T(8,128)}', space=vmem, size = 0x10000, scoped, tag = 'scratch operand']
  #allocation4 [shape = 's32[1]{0}', space=sflag, size = 0x4, scoped, tag = 'scoped memory for tpu_custom_call.1']
  #allocation5 [shape = 's32[1]{0:T(128)S(6)}', space=smem, size = 0x200, scoped, tag = 'prefetched SMEM operand 0']
  %s0 = inlined_call_operand.<no memory space> [shape: s32[1], index: 0, kind: input, shape index: {}]
  %s1 = inlined_call_operand.hbm [shape: s32[4,128], index: 1, kind: input, shape index: {}]
  %s2 = inlined_call_operand.hbm [shape: bf16[128,128], index: 2, kind: input, shape index: {}]
  %s3 = inlined_call_operand.hbm [shape: f32[128,128], index: 3, kind: output, shape index: {}]
  %s4 = sld [smem:[#allocation0]]
  $region38: #{tpu_custom_call.1} parent=0
    _
  %s6 = ssub.s32 1, %s4
  %s7 = scalar_select 0, %s6, %s4
  %8 = sst [smem:[#allocation5]] %s0
  $region1: #{tpu_custom_call.1} parent=0
    #allocation6 [shape = 'u8[2048]{0}', space=vmem, size = 0x800, scoped, tag = 'input window, operand 1, single buffered']
    #allocation7 [shape = 's32[1]{0}', space=sflag, size = 0x4, scoped, tag = 'scoped memory for tpu_custom_call.1']
    #allocation8 [shape = 's32[1]{0}', space=sflag, size = 0x4, scoped, tag = 'scoped memory for tpu_custom_call.1']
    #allocation9 [shape = 'u8[32768]{0}', space=vmem, size = 0x8000, scoped, tag = 'input window, operand 2, single buffered']
    #allocation10 [shape = 's32[1]{0}', space=sflag, size = 0x4, scoped, tag = 'scoped memory for tpu_custom_call.1']
    #allocation11 [shape = 'u8[65536]{0}', space=vmem, size = 0x10000, scoped, tag = 'output window, operand 0, single buffered']
    %9 = vsyncpa [#allocation7], 0
    %10 = vsyncpa [#allocation10], 0
    %11 = vsyncpa [#allocation8], 0
    // Predicated region
    $region2: #{tpu_custom_call.1} parent=1 // pred_check
      _
    $region3: #{tpu_custom_call.1} parent=1 // pred_check_branch
      %13 = sbr.rel (0) target = $region5
    $region4: #{tpu_custom_call.1} parent=1 // pred_region
      %s15 = ssub.s32 64, 64
      %16 = vsyncadd [#allocation7], %s15
      %s18 = sshll.u32 [#allocation6], 4
      %s19 = int_to_ptr.vmem [resolvable:$true] %s18
      %21 = dma.hbm_to_vmem [thread:$0]  %s1, 64, %s19, [#allocation7]
    $region5: #{tpu_custom_call.1} parent=1 // pred_fallthru
      _
    // Predicated region
    $region6: #{tpu_custom_call.1} parent=1 // pred_check
      _
    $region7: #{tpu_custom_call.1} parent=1 // pred_check_branch
      %23 = sbr.rel (0) target = $region9
    $region8: #{tpu_custom_call.1} parent=1 // pred_region
      %s25 = ssub.s32 1024, 1024
      %26 = vsyncadd [#allocation10], %s25
      %s27 = sshll.u32 [#allocation9], 4
      %s28 = int_to_ptr.vmem [resolvable:$true] %s27
      %33 = dma.hbm_to_vmem [thread:$0]  %s2, 1024, %s28, [#allocation10], 64, 64, 4
    $region9: #{tpu_custom_call.1} parent=1 // pred_fallthru
      _
    // Predicated region
    $region10: #{tpu_custom_call.1} parent=1 // pred_check
      _
    $region11: #{tpu_custom_call.1} parent=1 // pred_check_branch
      %35 = sbr.rel (0) target = $region13
    $region12: #{tpu_custom_call.1} parent=1 // pred_region
      %36 = dma.done [#allocation7], 64
    $region13: #{tpu_custom_call.1} parent=1 // pred_fallthru
      _
    // Predicated region
    $region14: #{tpu_custom_call.1} parent=1 // pred_check
      _
    $region15: #{tpu_custom_call.1} parent=1 // pred_check_branch
      %38 = sbr.rel (0) target = $region17
    $region16: #{tpu_custom_call.1} parent=1 // pred_region
      %39 = dma.done [#allocation10], 1024
    $region17: #{tpu_custom_call.1} parent=1 // pred_fallthru
      _
    %p41 = scmp.eq.s32.totalorder 0, 0
    // Predicated region
    $region18: #{tpu_custom_call.1} parent=1 // pred_check
      %p42 = pneg %p41
    $region19: #{tpu_custom_call.1} parent=1 // pred_check_branch
      %44 = sbr.rel (%p42) target = $region21
    $region20: #{tpu_custom_call.1} parent=1 // pred_region
      %45 = vst [vmem:[#allocation2] sm:$0xff] 0.0
      %46 = vst [vmem:[#allocation2 + $0x8] sm:$0xff] 0.0
      %47 = vst [vmem:[#allocation2 + $0x10] sm:$0xff] 0.0
      %48 = vst [vmem:[#allocation2 + $0x18] sm:$0xff] 0.0
      %49 = vst [vmem:[#allocation2 + $0x20] sm:$0xff] 0.0
      %50 = vst [vmem:[#allocation2 + $0x28] sm:$0xff] 0.0
      %51 = vst [vmem:[#allocation2 + $0x30] sm:$0xff] 0.0
      %52 = vst [vmem:[#allocation2 + $0x38] sm:$0xff] 0.0
      %53 = vst [vmem:[#allocation2 + $0x40] sm:$0xff] 0.0
      %54 = vst [vmem:[#allocation2 + $0x48] sm:$0xff] 0.0
      %55 = vst [vmem:[#allocation2 + $0x50] sm:$0xff] 0.0
      %56 = vst [vmem:[#allocation2 + $0x58] sm:$0xff] 0.0
      %57 = vst [vmem:[#allocation2 + $0x60] sm:$0xff] 0.0
      %58 = vst [vmem:[#allocation2 + $0x68] sm:$0xff] 0.0
      %59 = vst [vmem:[#allocation2 + $0x70] sm:$0xff] 0.0
      %60 = vst [vmem:[#allocation2 + $0x78] sm:$0xff] 0.0
    $region21: #{tpu_custom_call.1} parent=1 // pred_fallthru
      _
    %s61 = sadd.s32 0, 0
    %s62 = sld [smem:[#allocation5 + %s61]]
    %p63 = scmp.gt.s32.totalorder %s62, 0
    // Predicated region
    $region22: #{tpu_custom_call.1} parent=1 // pred_check
      %p64 = pneg %p63
    $region23: #{tpu_custom_call.1} parent=1 // pred_check_branch
      %66 = sbr.rel (%p64) target = $region25
    $region24: #{tpu_custom_call.1} parent=1 // pred_region
      %s67 = smul.u32 0, 128
      %v68 = vlaneseq
      %v69 = vshrl.u32 %v68, 7
      %v70 = vadd.s32 %v69, 8
      %v71 = vadd.s32 %v69, 16
      %v72 = vadd.s32 %v69, 24
      %v73 = vadd.s32 %v69, 32
      %v74 = vadd.s32 %v69, 40
      %v75 = vadd.s32 %v69, 48
      %v76 = vadd.s32 %v69, 56
      %v77 = vadd.s32 %v69, 64
      %v78 = vadd.s32 %v69, 72
      %v79 = vadd.s32 %v69, 80
      %v80 = vadd.s32 %v69, 88
      %v81 = vadd.s32 %v69, 96
      %v82 = vadd.s32 %v69, 104
      %v83 = vadd.s32 %v69, 112
      %v84 = vadd.s32 %v69, 120
      %v85 = vstv %s67
      %v86 = vadd.s32 %v85, %v69
      %v87 = vadd.s32 %v85, %v70
      %v88 = vadd.s32 %v85, %v71
      %v89 = vadd.s32 %v85, %v72
      %v90 = vadd.s32 %v85, %v73
      %v91 = vadd.s32 %v85, %v74
      %v92 = vadd.s32 %v85, %v75
      %v93 = vadd.s32 %v85, %v76
      %v94 = vadd.s32 %v85, %v77
      %v95 = vadd.s32 %v85, %v78
      %v96 = vadd.s32 %v85, %v79
      %v97 = vadd.s32 %v85, %v80
      %v98 = vadd.s32 %v85, %v81
      %v99 = vadd.s32 %v85, %v82
      %v100 = vadd.s32 %v85, %v83
      %v101 = vadd.s32 %v85, %v84
      %v102 = vld [vmem:[#allocation6] sm:$0xf]
      %v103 = vlaneseq
      %v104 = vshrl.u32 %v103, 7
      %v105 = vsub.s32 0, %v104
      %v106 = vrot.slane %v102, %v105
      %vm107 = vcmp.eq.s32.totalorder %v106, %v86
      %vm108 = vcmp.eq.s32.totalorder %v106, %v87
      %vm109 = vcmp.eq.s32.totalorder %v106, %v88
      %vm110 = vcmp.eq.s32.totalorder %v106, %v89
      %vm111 = vcmp.eq.s32.totalorder %v106, %v90
      %vm112 = vcmp.eq.s32.totalorder %v106, %v91
      %vm113 = vcmp.eq.s32.totalorder %v106, %v92
      %vm114 = vcmp.eq.s32.totalorder %v106, %v93
      %vm115 = vcmp.eq.s32.totalorder %v106, %v94
      %vm116 = vcmp.eq.s32.totalorder %v106, %v95
      %vm117 = vcmp.eq.s32.totalorder %v106, %v96
      %vm118 = vcmp.eq.s32.totalorder %v106, %v97
      %vm119 = vcmp.eq.s32.totalorder %v106, %v98
      %vm120 = vcmp.eq.s32.totalorder %v106, %v99
      %vm121 = vcmp.eq.s32.totalorder %v106, %v100
      %vm122 = vcmp.eq.s32.totalorder %v106, %v101
      %v123 = vsel %vm107, 1, 0
      %v124 = vsel %vm108, 1, 0
      %v125 = vsel %vm109, 1, 0
      %v126 = vsel %vm110, 1, 0
      %v127 = vsel %vm111, 1, 0
      %v128 = vsel %vm112, 1, 0
      %v129 = vsel %vm113, 1, 0
      %v130 = vsel %vm114, 1, 0
      %v131 = vsel %vm115, 1, 0
      %v132 = vsel %vm116, 1, 0
      %v133 = vsel %vm117, 1, 0
      %v134 = vsel %vm118, 1, 0
      %v135 = vsel %vm119, 1, 0
      %v136 = vsel %vm120, 1, 0
      %v137 = vsel %vm121, 1, 0
      %v138 = vsel %vm122, 1, 0
      %v139 = vlaneseq
      %v140 = vshrl.u32 %v139, 7
      %v141 = vsub.s32 1, %v140
      %v142 = vrot.slane %v102, %v141
      %vm143 = vcmp.eq.s32.totalorder %v142, %v86
      %vm144 = vcmp.eq.s32.totalorder %v142, %v87
      %vm145 = vcmp.eq.s32.totalorder %v142, %v88
      %vm146 = vcmp.eq.s32.totalorder %v142, %v89
      %vm147 = vcmp.eq.s32.totalorder %v142, %v90
      %vm148 = vcmp.eq.s32.totalorder %v142, %v91
      %vm149 = vcmp.eq.s32.totalorder %v142, %v92
      %vm150 = vcmp.eq.s32.totalorder %v142, %v93
      %vm151 = vcmp.eq.s32.totalorder %v142, %v94
      %vm152 = vcmp.eq.s32.totalorder %v142, %v95
      %vm153 = vcmp.eq.s32.totalorder %v142, %v96
      %vm154 = vcmp.eq.s32.totalorder %v142, %v97
      %vm155 = vcmp.eq.s32.totalorder %v142, %v98
      %vm156 = vcmp.eq.s32.totalorder %v142, %v99
      %vm157 = vcmp.eq.s32.totalorder %v142, %v100
      %vm158 = vcmp.eq.s32.totalorder %v142, %v101
      %v159 = vsel %vm143, 1, 0
      %v160 = vsel %vm144, 1, 0
      %v161 = vsel %vm145, 1, 0
      %v162 = vsel %vm146, 1, 0
      %v163 = vsel %vm147, 1, 0
      %v164 = vsel %vm148, 1, 0
      %v165 = vsel %vm149, 1, 0
      %v166 = vsel %vm150, 1, 0
      %v167 = vsel %vm151, 1, 0
      %v168 = vsel %vm152, 1, 0
      %v169 = vsel %vm153, 1, 0
      %v170 = vsel %vm154, 1, 0
      %v171 = vsel %vm155, 1, 0
      %v172 = vsel %vm156, 1, 0
      %v173 = vsel %vm157, 1, 0
      %v174 = vsel %vm158, 1, 0
      %v175 = vadd.s32 %v123, %v159
      %v176 = vadd.s32 %v124, %v160
      %v177 = vadd.s32 %v125, %v161
      %v178 = vadd.s32 %v126, %v162
      %v179 = vadd.s32 %v127, %v163
      %v180 = vadd.s32 %v128, %v164
      %v181 = vadd.s32 %v129, %v165
      %v182 = vadd.s32 %v130, %v166
      %v183 = vadd.s32 %v131, %v167
      %v184 = vadd.s32 %v132, %v168
      %v185 = vadd.s32 %v133, %v169
      %v186 = vadd.s32 %v134, %v170
      %v187 = vadd.s32 %v135, %v171
      %v188 = vadd.s32 %v136, %v172
      %v189 = vadd.s32 %v137, %v173
      %v190 = vadd.s32 %v138, %v174
      %v191 = vlaneseq
      %v192 = vshrl.u32 %v191, 7
      %v193 = vsub.s32 2, %v192
      %v194 = vrot.slane %v102, %v193
      %vm195 = vcmp.eq.s32.totalorder %v194, %v86
      %vm196 = vcmp.eq.s32.totalorder %v194, %v87
      %vm197 = vcmp.eq.s32.totalorder %v194, %v88
      %vm198 = vcmp.eq.s32.totalorder %v194, %v89
      %vm199 = vcmp.eq.s32.totalorder %v194, %v90
      %vm200 = vcmp.eq.s32.totalorder %v194, %v91
      %vm201 = vcmp.eq.s32.totalorder %v194, %v92
      %vm202 = vcmp.eq.s32.totalorder %v194, %v93
      %vm203 = vcmp.eq.s32.totalorder %v194, %v94
      %vm204 = vcmp.eq.s32.totalorder %v194, %v95
      %vm205 = vcmp.eq.s32.totalorder %v194, %v96
      %vm206 = vcmp.eq.s32.totalorder %v194, %v97
      %vm207 = vcmp.eq.s32.totalorder %v194, %v98
      %vm208 = vcmp.eq.s32.totalorder %v194, %v99
      %vm209 = vcmp.eq.s32.totalorder %v194, %v100
      %vm210 = vcmp.eq.s32.totalorder %v194, %v101
      %v211 = vsel %vm195, 1, 0
      %v212 = vsel %vm196, 1, 0
      %v213 = vsel %vm197, 1, 0
      %v214 = vsel %vm198, 1, 0
      %v215 = vsel %vm199, 1, 0
      %v216 = vsel %vm200, 1, 0
      %v217 = vsel %vm201, 1, 0
      %v218 = vsel %vm202, 1, 0
      %v219 = vsel %vm203, 1, 0
      %v220 = vsel %vm204, 1, 0
      %v221 = vsel %vm205, 1, 0
      %v222 = vsel %vm206, 1, 0
      %v223 = vsel %vm207, 1, 0
      %v224 = vsel %vm208, 1, 0
      %v225 = vsel %vm209, 1, 0
      %v226 = vsel %vm210, 1, 0
      %v227 = vadd.s32 %v175, %v211
      %v228 = vadd.s32 %v176, %v212
      %v229 = vadd.s32 %v177, %v213
      %v230 = vadd.s32 %v178, %v214
      %v231 = vadd.s32 %v179, %v215
      %v232 = vadd.s32 %v180, %v216
      %v233 = vadd.s32 %v181, %v217
      %v234 = vadd.s32 %v182, %v218
      %v235 = vadd.s32 %v183, %v219
      %v236 = vadd.s32 %v184, %v220
      %v237 = vadd.s32 %v185, %v221
      %v238 = vadd.s32 %v186, %v222
      %v239 = vadd.s32 %v187, %v223
      %v240 = vadd.s32 %v188, %v224
      %v241 = vadd.s32 %v189, %v225
      %v242 = vadd.s32 %v190, %v226
      %v243 = vlaneseq
      %v244 = vshrl.u32 %v243, 7
      %v245 = vsub.s32 3, %v244
      %v246 = vrot.slane %v102, %v245
      %vm247 = vcmp.eq.s32.totalorder %v246, %v86
      %vm248 = vcmp.eq.s32.totalorder %v246, %v87
      %vm249 = vcmp.eq.s32.totalorder %v246, %v88
      %vm250 = vcmp.eq.s32.totalorder %v246, %v89
      %vm251 = vcmp.eq.s32.totalorder %v246, %v90
      %vm252 = vcmp.eq.s32.totalorder %v246, %v91
      %vm253 = vcmp.eq.s32.totalorder %v246, %v92
      %vm254 = vcmp.eq.s32.totalorder %v246, %v93
      %vm255 = vcmp.eq.s32.totalorder %v246, %v94
      %vm256 = vcmp.eq.s32.totalorder %v246, %v95
      %vm257 = vcmp.eq.s32.totalorder %v246, %v96
      %vm258 = vcmp.eq.s32.totalorder %v246, %v97
      %vm259 = vcmp.eq.s32.totalorder %v246, %v98
      %vm260 = vcmp.eq.s32.totalorder %v246, %v99
      %vm261 = vcmp.eq.s32.totalorder %v246, %v100
      %vm262 = vcmp.eq.s32.totalorder %v246, %v101
      %v263 = vsel %vm247, 1, 0
      %v264 = vsel %vm248, 1, 0
      %v265 = vsel %vm249, 1, 0
      %v266 = vsel %vm250, 1, 0
      %v267 = vsel %vm251, 1, 0
      %v268 = vsel %vm252, 1, 0
      %v269 = vsel %vm253, 1, 0
      %v270 = vsel %vm254, 1, 0
      %v271 = vsel %vm255, 1, 0
      %v272 = vsel %vm256, 1, 0
      %v273 = vsel %vm257, 1, 0
      %v274 = vsel %vm258, 1, 0
      %v275 = vsel %vm259, 1, 0
      %v276 = vsel %vm260, 1, 0
      %v277 = vsel %vm261, 1, 0
      %v278 = vsel %vm262, 1, 0
      %v279 = vadd.s32 %v227, %v263
      %v280 = vadd.s32 %v228, %v264
      %v281 = vadd.s32 %v229, %v265
      %v282 = vadd.s32 %v230, %v266
      %v283 = vadd.s32 %v231, %v267
      %v284 = vadd.s32 %v232, %v268
      %v285 = vadd.s32 %v233, %v269
      %v286 = vadd.s32 %v234, %v270
      %v287 = vadd.s32 %v235, %v271
      %v288 = vadd.s32 %v236, %v272
      %v289 = vadd.s32 %v237, %v273
      %v290 = vadd.s32 %v238, %v274
      %v291 = vadd.s32 %v239, %v275
      %v292 = vadd.s32 %v240, %v276
      %v293 = vadd.s32 %v241, %v277
      %v294 = vadd.s32 %v242, %v278
      %v295 = vcvt.s32.f32 %v279
      %v296 = vcvt.s32.f32 %v280
      %v297 = vcvt.s32.f32 %v281
      %v298 = vcvt.s32.f32 %v282
      %v299 = vcvt.s32.f32 %v283
      %v300 = vcvt.s32.f32 %v284
      %v301 = vcvt.s32.f32 %v285
      %v302 = vcvt.s32.f32 %v286
      %v303 = vcvt.s32.f32 %v287
      %v304 = vcvt.s32.f32 %v288
      %v305 = vcvt.s32.f32 %v289
      %v306 = vcvt.s32.f32 %v290
      %v307 = vcvt.s32.f32 %v291
      %v308 = vcvt.s32.f32 %v292
      %v309 = vcvt.s32.f32 %v293
      %v310 = vcvt.s32.f32 %v294
      %v311 = vpack.c.bf16 %v296, %v295
      %v312 = vpack.c.bf16 %v298, %v297
      %v313 = vpack.c.bf16 %v300, %v299
      %v314 = vpack.c.bf16 %v302, %v301
      %v315 = vpack.c.bf16 %v304, %v303
      %v316 = vpack.c.bf16 %v306, %v305
      %v317 = vpack.c.bf16 %v308, %v307
      %v318 = vpack.c.bf16 %v310, %v309
      %v319 = vld [vmem:[#allocation2] sm:$0xff]
      %v320 = vld [vmem:[#allocation2 + $0x8] sm:$0xff]
      %v321 = vld [vmem:[#allocation2 + $0x10] sm:$0xff]
      %v322 = vld [vmem:[#allocation2 + $0x18] sm:$0xff]
      %v323 = vld [vmem:[#allocation2 + $0x20] sm:$0xff]
      %v324 = vld [vmem:[#allocation2 + $0x28] sm:$0xff]
      %v325 = vld [vmem:[#allocation2 + $0x30] sm:$0xff]
      %v326 = vld [vmem:[#allocation2 + $0x38] sm:$0xff]
      %v327 = vld [vmem:[#allocation2 + $0x40] sm:$0xff]
      %v328 = vld [vmem:[#allocation2 + $0x48] sm:$0xff]
      %v329 = vld [vmem:[#allocation2 + $0x50] sm:$0xff]
      %v330 = vld [vmem:[#allocation2 + $0x58] sm:$0xff]
      %v331 = vld [vmem:[#allocation2 + $0x60] sm:$0xff]
      %v332 = vld [vmem:[#allocation2 + $0x68] sm:$0xff]
      %v333 = vld [vmem:[#allocation2 + $0x70] sm:$0xff]
      %v334 = vld [vmem:[#allocation2 + $0x78] sm:$0xff]
      %v335 = vld [vmem:[#allocation9] sm:$0xf]
      %v336 = vld [vmem:[#allocation9 + $0x4] sm:$0xf]
      %v337 = vld [vmem:[#allocation9 + $0x8] sm:$0xf]
      %v338 = vld [vmem:[#allocation9 + $0xc] sm:$0xf]
      %v339 = vld [vmem:[#allocation9 + $0x10] sm:$0xf]
      %v340 = vld [vmem:[#allocation9 + $0x14] sm:$0xf]
      %v341 = vld [vmem:[#allocation9 + $0x18] sm:$0xf]
      %v342 = vld [vmem:[#allocation9 + $0x1c] sm:$0xf]
      %v343 = vld [vmem:[#allocation9 + $0x20] sm:$0xf]
      %v344 = vld [vmem:[#allocation9 + $0x24] sm:$0xf]
      %v345 = vld [vmem:[#allocation9 + $0x28] sm:$0xf]
      %v346 = vld [vmem:[#allocation9 + $0x2c] sm:$0xf]
      %v347 = vld [vmem:[#allocation9 + $0x30] sm:$0xf]
      %v348 = vld [vmem:[#allocation9 + $0x34] sm:$0xf]
      %v349 = vld [vmem:[#allocation9 + $0x38] sm:$0xf]
      %v350 = vld [vmem:[#allocation9 + $0x3c] sm:$0xf]
      %v367 = vunpack.c.l.b16 %v335
      %v368 = vunpack.c.l.b16 %v336
      %v369 = vunpack.c.l.b16 %v337
      %v370 = vunpack.c.l.b16 %v338
      %v371 = vunpack.c.l.b16 %v339
      %v372 = vunpack.c.l.b16 %v340
      %v373 = vunpack.c.l.b16 %v341
      %v374 = vunpack.c.l.b16 %v342
      %v375 = vunpack.c.l.b16 %v343
      %v376 = vunpack.c.l.b16 %v344
      %v377 = vunpack.c.l.b16 %v345
      %v378 = vunpack.c.l.b16 %v346
      %v379 = vunpack.c.l.b16 %v347
      %v380 = vunpack.c.l.b16 %v348
      %v381 = vunpack.c.l.b16 %v349
      %v382 = vunpack.c.l.b16 %v350
      %v383 = vpack.c.b16 %v368, %v367
      %v384 = vpack.c.b16 %v370, %v369
      %v385 = vpack.c.b16 %v372, %v371
      %v386 = vpack.c.b16 %v374, %v373
      %v387 = vpack.c.b16 %v376, %v375
      %v388 = vpack.c.b16 %v378, %v377
      %v389 = vpack.c.b16 %v380, %v379
      %v390 = vpack.c.b16 %v382, %v381
      %399 = vmatprep.subr.bf16.mxu0 0
      %400 = vmatpush1.bf16.msra.mxu0 %v383
      %401 = vmatprep.subr.bf16.mxu0 0
      %402 = vmatpush1.bf16.msra.mxu0 %v384
      %403 = vmatprep.subr.bf16.mxu0 0
      %404 = vmatpush1.bf16.msra.mxu0 %v385
      %405 = vmatprep.subr.bf16.mxu0 0
      %406 = vmatpush1.bf16.msra.mxu0 %v386
      %407 = vmatprep.subr.bf16.mxu0 0
      %408 = vmatpush1.bf16.msra.mxu0 %v387
      %409 = vmatprep.subr.bf16.mxu0 0
      %410 = vmatpush1.bf16.msra.mxu0 %v388
      %411 = vmatprep.subr.bf16.mxu0 0
      %412 = vmatpush1.bf16.msra.mxu0 %v389
      %413 = vmatprep.subr.bf16.mxu0 0
      %414 = vmatpush1.bf16.msra.mxu0 %v390
      %415 = vmatprep.subr.bf16.mxu0 0
      %416 = vmatpush1.bf16.msra.mxu0 0
      %417 = vmatprep.subr.bf16.mxu0 0
      %418 = vmatpush1.bf16.msra.mxu0 0
      %419 = vmatprep.subr.bf16.mxu0 0
      %420 = vmatpush1.bf16.msra.mxu0 0
      %421 = vmatprep.subr.bf16.mxu0 0
      %422 = vmatpush1.bf16.msra.mxu0 0
      %423 = vmatprep.subr.bf16.mxu0 0
      %424 = vmatpush1.bf16.msra.mxu0 0
      %425 = vmatprep.subr.bf16.mxu0 0
      %426 = vmatpush1.bf16.msra.mxu0 0
      %427 = vmatprep.subr.bf16.mxu0 0
      %428 = vmatpush1.bf16.msra.mxu0 0
      %429 = vmatprep.subr.bf16.mxu0 0
      %430 = vmatpush1.bf16.msra.mxu0 0
      %431 = vmatprep.mubr.bf16.mxu0 0
      %432 = vmatmul.mubr.bf16.gmra.mrb[0].mxu0 %v311
      %v433 = vpop.f32.mrb[0].mxu0
      %v434 = vadd.f32 0.0, %v433
      %v435 = vpop.f32.mrb[0].mxu0
      %v436 = vpop.f32.mrb[0].mxu0
      %v437 = vadd.f32 0.0, %v436
      %v438 = vpop.f32.mrb[0].mxu0
      %439 = vmatprep.mubr.bf16.mxu0 0
      %440 = vmatmul.mubr.bf16.gmra.mrb[0].mxu0 %v312
      %v441 = vpop.f32.mrb[0].mxu0
      %v442 = vadd.f32 0.0, %v441
      %v443 = vpop.f32.mrb[0].mxu0
      %v444 = vpop.f32.mrb[0].mxu0
      %v445 = vadd.f32 0.0, %v444
      %v446 = vpop.f32.mrb[0].mxu0
      %447 = vmatprep.mubr.bf16.mxu0 0
      %448 = vmatmul.mubr.bf16.gmra.mrb[0].mxu0 %v313
      %v449 = vpop.f32.mrb[0].mxu0
      %v450 = vadd.f32 0.0, %v449
      %v451 = vpop.f32.mrb[0].mxu0
      %v452 = vpop.f32.mrb[0].mxu0
      %v453 = vadd.f32 0.0, %v452
      %v454 = vpop.f32.mrb[0].mxu0
      %455 = vmatprep.mubr.bf16.mxu0 0
      %456 = vmatmul.mubr.bf16.gmra.mrb[0].mxu0 %v314
      %v457 = vpop.f32.mrb[0].mxu0
      %v458 = vadd.f32 0.0, %v457
      %v459 = vpop.f32.mrb[0].mxu0
      %v460 = vpop.f32.mrb[0].mxu0
      %v461 = vadd.f32 0.0, %v460
      %v462 = vpop.f32.mrb[0].mxu0
      %463 = vmatprep.mubr.bf16.mxu0 0
      %464 = vmatmul.mubr.bf16.gmra.mrb[0].mxu0 %v315
      %v465 = vpop.f32.mrb[0].mxu0
      %v466 = vadd.f32 0.0, %v465
      %v467 = vpop.f32.mrb[0].mxu0
      %v468 = vpop.f32.mrb[0].mxu0
      %v469 = vadd.f32 0.0, %v468
      %v470 = vpop.f32.mrb[0].mxu0
      %471 = vmatprep.mubr.bf16.mxu0 0
      %472 = vmatmul.mubr.bf16.gmra.mrb[0].mxu0 %v316
      %v473 = vpop.f32.mrb[0].mxu0
      %v474 = vadd.f32 0.0, %v473
      %v475 = vpop.f32.mrb[0].mxu0
      %v476 = vpop.f32.mrb[0].mxu0
      %v477 = vadd.f32 0.0, %v476
      %v478 = vpop.f32.mrb[0].mxu0
      %479 = vmatprep.mubr.bf16.mxu0 0
      %480 = vmatmul.mubr.bf16.gmra.mrb[0].mxu0 %v317
      %v481 = vpop.f32.mrb[0].mxu0
      %v482 = vadd.f32 0.0, %v481
      %v483 = vpop.f32.mrb[0].mxu0
      %v484 = vpop.f32.mrb[0].mxu0
      %v485 = vadd.f32 0.0, %v484
      %v486 = vpop.f32.mrb[0].mxu0
      %487 = vmatprep.mubr.bf16.mxu0 0
      %488 = vmatmul.mubr.bf16.gmra.mrb[0].mxu0 %v318
      %v489 = vpop.f32.mrb[0].mxu0
      %v490 = vadd.f32 0.0, %v489
      %v491 = vpop.f32.mrb[0].mxu0
      %v492 = vpop.f32.mrb[0].mxu0
      %v493 = vadd.f32 0.0, %v492
      %v494 = vpop.f32.mrb[0].mxu0
      %495 = vdwg.mxu0
      %v496 = vadd.f32 %v319, %v434
      %v497 = vadd.f32 %v320, %v437
      %v498 = vadd.f32 %v321, %v442
      %v499 = vadd.f32 %v322, %v445
      %v500 = vadd.f32 %v323, %v450
      %v501 = vadd.f32 %v324, %v453
      %v502 = vadd.f32 %v325, %v458
      %v503 = vadd.f32 %v326, %v461
      %v504 = vadd.f32 %v327, %v466
      %v505 = vadd.f32 %v328, %v469
      %v506 = vadd.f32 %v329, %v474
      %v507 = vadd.f32 %v330, %v477
      %v508 = vadd.f32 %v331, %v482
      %v509 = vadd.f32 %v332, %v485
      %v510 = vadd.f32 %v333, %v490
      %v511 = vadd.f32 %v334, %v493
      %512 = vst [vmem:[#allocation2] sm:$0xff] %v496
      %513 = vst [vmem:[#allocation2 + $0x8] sm:$0xff] %v497
      %514 = vst [vmem:[#allocation2 + $0x10] sm:$0xff] %v498
      %515 = vst [vmem:[#allocation2 + $0x18] sm:$0xff] %v499
      %516 = vst [vmem:[#allocation2 + $0x20] sm:$0xff] %v500
      %517 = vst [vmem:[#allocation2 + $0x28] sm:$0xff] %v501
      %518 = vst [vmem:[#allocation2 + $0x30] sm:$0xff] %v502
      %519 = vst [vmem:[#allocation2 + $0x38] sm:$0xff] %v503
      %520 = vst [vmem:[#allocation2 + $0x40] sm:$0xff] %v504
      %521 = vst [vmem:[#allocation2 + $0x48] sm:$0xff] %v505
      %522 = vst [vmem:[#allocation2 + $0x50] sm:$0xff] %v506
      %523 = vst [vmem:[#allocation2 + $0x58] sm:$0xff] %v507
      %524 = vst [vmem:[#allocation2 + $0x60] sm:$0xff] %v508
      %525 = vst [vmem:[#allocation2 + $0x68] sm:$0xff] %v509
      %526 = vst [vmem:[#allocation2 + $0x70] sm:$0xff] %v510
      %527 = vst [vmem:[#allocation2 + $0x78] sm:$0xff] %v511
    $region25: #{tpu_custom_call.1} parent=1 // pred_fallthru
      _
    // Predicated region
    $region26: #{tpu_custom_call.1} parent=1 // pred_check
      %p528 = pneg %p41
    $region27: #{tpu_custom_call.1} parent=1 // pred_check_branch
      %530 = sbr.rel (%p528) target = $region29
    $region28: #{tpu_custom_call.1} parent=1 // pred_region
      %v531 = vld [vmem:[#allocation2] sm:$0xff]
      %v532 = vld [vmem:[#allocation2 + $0x8] sm:$0xff]
      %v533 = vld [vmem:[#allocation2 + $0x10] sm:$0xff]
      %v534 = vld [vmem:[#allocation2 + $0x18] sm:$0xff]
      %v535 = vld [vmem:[#allocation2 + $0x20] sm:$0xff]
      %v536 = vld [vmem:[#allocation2 + $0x28] sm:$0xff]
      %v537 = vld [vmem:[#allocation2 + $0x30] sm:$0xff]
      %v538 = vld [vmem:[#allocation2 + $0x38] sm:$0xff]
      %v539 = vld [vmem:[#allocation2 + $0x40] sm:$0xff]
      %v540 = vld [vmem:[#allocation2 + $0x48] sm:$0xff]
      %v541 = vld [vmem:[#allocation2 + $0x50] sm:$0xff]
      %v542 = vld [vmem:[#allocation2 + $0x58] sm:$0xff]
      %v543 = vld [vmem:[#allocation2 + $0x60] sm:$0xff]
      %v544 = vld [vmem:[#allocation2 + $0x68] sm:$0xff]
      %v545 = vld [vmem:[#allocation2 + $0x70] sm:$0xff]
      %v546 = vld [vmem:[#allocation2 + $0x78] sm:$0xff]
      %v547 = vmax.f32 %v531, 1.0
      %v548 = vmax.f32 %v532, 1.0
      %v549 = vmax.f32 %v533, 1.0
      %v550 = vmax.f32 %v534, 1.0
      %v551 = vmax.f32 %v535, 1.0
      %v552 = vmax.f32 %v536, 1.0
      %v553 = vmax.f32 %v537, 1.0
      %v554 = vmax.f32 %v538, 1.0
      %v555 = vmax.f32 %v539, 1.0
      %v556 = vmax.f32 %v540, 1.0
      %v557 = vmax.f32 %v541, 1.0
      %v558 = vmax.f32 %v542, 1.0
      %v559 = vmax.f32 %v543, 1.0
      %v560 = vmax.f32 %v544, 1.0
      %v561 = vmax.f32 %v545, 1.0
      %v562 = vmax.f32 %v546, 1.0
      %564 = vset.pattern.permute.xlu0 32
      %565 = vperm.xlu0 %564, %v547
      %v566 = vpop.permute.xlu0 %565
      %569 = vset.pattern.permute.xlu0 32
      %570 = vperm.xlu0 %569, %v548
      %v571 = vpop.permute.xlu0 %570
      %574 = vset.pattern.permute.xlu0 32
      %575 = vperm.xlu0 %574, %v549
      %v576 = vpop.permute.xlu0 %575
      %579 = vset.pattern.permute.xlu0 32
      %580 = vperm.xlu0 %579, %v550
      %v581 = vpop.permute.xlu0 %580
      %584 = vset.pattern.permute.xlu0 32
      %585 = vperm.xlu0 %584, %v551
      %v586 = vpop.permute.xlu0 %585
      %589 = vset.pattern.permute.xlu0 32
      %590 = vperm.xlu0 %589, %v552
      %v591 = vpop.permute.xlu0 %590
      %594 = vset.pattern.permute.xlu0 32
      %595 = vperm.xlu0 %594, %v553
      %v596 = vpop.permute.xlu0 %595
      %599 = vset.pattern.permute.xlu0 32
      %600 = vperm.xlu0 %599, %v554
      %v601 = vpop.permute.xlu0 %600
      %604 = vset.pattern.permute.xlu0 32
      %605 = vperm.xlu0 %604, %v555
      %v606 = vpop.permute.xlu0 %605
      %609 = vset.pattern.permute.xlu0 32
      %610 = vperm.xlu0 %609, %v556
      %v611 = vpop.permute.xlu0 %610
      %614 = vset.pattern.permute.xlu0 32
      %615 = vperm.xlu0 %614, %v557
      %v616 = vpop.permute.xlu0 %615
      %619 = vset.pattern.permute.xlu0 32
      %620 = vperm.xlu0 %619, %v558
      %v621 = vpop.permute.xlu0 %620
      %624 = vset.pattern.permute.xlu0 32
      %625 = vperm.xlu0 %624, %v559
      %v626 = vpop.permute.xlu0 %625
      %629 = vset.pattern.permute.xlu0 32
      %630 = vperm.xlu0 %629, %v560
      %v631 = vpop.permute.xlu0 %630
      %634 = vset.pattern.permute.xlu0 32
      %635 = vperm.xlu0 %634, %v561
      %v636 = vpop.permute.xlu0 %635
      %639 = vset.pattern.permute.xlu0 32
      %640 = vperm.xlu0 %639, %v562
      %v641 = vpop.permute.xlu0 %640
      %v643 = vrcp.pop %v566
      %v644 = vmul.f32 %v531, %v643
      %v645 = vrcp.pop %v571
      %v646 = vmul.f32 %v532, %v645
      %v647 = vrcp.pop %v576
      %v648 = vmul.f32 %v533, %v647
      %v649 = vrcp.pop %v581
      %v650 = vmul.f32 %v534, %v649
      %v651 = vrcp.pop %v586
      %v652 = vmul.f32 %v535, %v651
      %v653 = vrcp.pop %v591
      %v654 = vmul.f32 %v536, %v653
      %v655 = vrcp.pop %v596
      %v656 = vmul.f32 %v537, %v655
      %v657 = vrcp.pop %v601
      %v658 = vmul.f32 %v538, %v657
      %v659 = vrcp.pop %v606
      %v660 = vmul.f32 %v539, %v659
      %v661 = vrcp.pop %v611
      %v662 = vmul.f32 %v540, %v661
      %v663 = vrcp.pop %v616
      %v664 = vmul.f32 %v541, %v663
      %v665 = vrcp.pop %v621
      %v666 = vmul.f32 %v542, %v665
      %v667 = vrcp.pop %v626
      %v668 = vmul.f32 %v543, %v667
      %v669 = vrcp.pop %v631
      %v670 = vmul.f32 %v544, %v669
      %v671 = vrcp.pop %v636
      %v672 = vmul.f32 %v545, %v671
      %v673 = vrcp.pop %v641
      %v674 = vmul.f32 %v546, %v673
      %vm675 = vcmp.gt.f32.partialorder %v531, 0.0
      %vm676 = vcmp.gt.f32.partialorder %v532, 0.0
      %vm677 = vcmp.gt.f32.partialorder %v533, 0.0
      %vm678 = vcmp.gt.f32.partialorder %v534, 0.0
      %vm679 = vcmp.gt.f32.partialorder %v535, 0.0
      %vm680 = vcmp.gt.f32.partialorder %v536, 0.0
      %vm681 = vcmp.gt.f32.partialorder %v537, 0.0
      %vm682 = vcmp.gt.f32.partialorder %v538, 0.0
      %vm683 = vcmp.gt.f32.partialorder %v539, 0.0
      %vm684 = vcmp.gt.f32.partialorder %v540, 0.0
      %vm685 = vcmp.gt.f32.partialorder %v541, 0.0
      %vm686 = vcmp.gt.f32.partialorder %v542, 0.0
      %vm687 = vcmp.gt.f32.partialorder %v543, 0.0
      %vm688 = vcmp.gt.f32.partialorder %v544, 0.0
      %vm689 = vcmp.gt.f32.partialorder %v545, 0.0
      %vm690 = vcmp.gt.f32.partialorder %v546, 0.0
      %v691 = vsel %vm675, 1, 0
      %v692 = vsel %vm676, 1, 0
      %v693 = vsel %vm677, 1, 0
      %v694 = vsel %vm678, 1, 0
      %v695 = vsel %vm679, 1, 0
      %v696 = vsel %vm680, 1, 0
      %v697 = vsel %vm681, 1, 0
      %v698 = vsel %vm682, 1, 0
      %v699 = vsel %vm683, 1, 0
      %v700 = vsel %vm684, 1, 0
      %v701 = vsel %vm685, 1, 0
      %v702 = vsel %vm686, 1, 0
      %v703 = vsel %vm687, 1, 0
      %v704 = vsel %vm688, 1, 0
      %v705 = vsel %vm689, 1, 0
      %v706 = vsel %vm690, 1, 0
      %707 = vset.pattern.permute.xlu0 32
      %708 = vperm.xlu0 %707, %v691
      %v709 = vpop.permute.xlu0 %708
      %710 = vset.pattern.permute.xlu0 32
      %711 = vperm.xlu0 %710, %v692
      %v712 = vpop.permute.xlu0 %711
      %713 = vset.pattern.permute.xlu0 32
      %714 = vperm.xlu0 %713, %v693
      %v715 = vpop.permute.xlu0 %714
      %716 = vset.pattern.permute.xlu0 32
      %717 = vperm.xlu0 %716, %v694
      %v718 = vpop.permute.xlu0 %717
      %719 = vset.pattern.permute.xlu0 32
      %720 = vperm.xlu0 %719, %v695
      %v721 = vpop.permute.xlu0 %720
      %722 = vset.pattern.permute.xlu0 32
      %723 = vperm.xlu0 %722, %v696
      %v724 = vpop.permute.xlu0 %723
      %725 = vset.pattern.permute.xlu0 32
      %726 = vperm.xlu0 %725, %v697
      %v727 = vpop.permute.xlu0 %726
      %728 = vset.pattern.permute.xlu0 32
      %729 = vperm.xlu0 %728, %v698
      %v730 = vpop.permute.xlu0 %729
      %731 = vset.pattern.permute.xlu0 32
      %732 = vperm.xlu0 %731, %v699
      %v733 = vpop.permute.xlu0 %732
      %734 = vset.pattern.permute.xlu0 32
      %735 = vperm.xlu0 %734, %v700
      %v736 = vpop.permute.xlu0 %735
      %737 = vset.pattern.permute.xlu0 32
      %738 = vperm.xlu0 %737, %v701
      %v739 = vpop.permute.xlu0 %738
      %740 = vset.pattern.permute.xlu0 32
      %741 = vperm.xlu0 %740, %v702
      %v742 = vpop.permute.xlu0 %741
      %743 = vset.pattern.permute.xlu0 32
      %744 = vperm.xlu0 %743, %v703
      %v745 = vpop.permute.xlu0 %744
      %746 = vset.pattern.permute.xlu0 32
      %747 = vperm.xlu0 %746, %v704
      %v748 = vpop.permute.xlu0 %747
      %749 = vset.pattern.permute.xlu0 32
      %750 = vperm.xlu0 %749, %v705
      %v751 = vpop.permute.xlu0 %750
      %752 = vset.pattern.permute.xlu0 32
      %753 = vperm.xlu0 %752, %v706
      %v754 = vpop.permute.xlu0 %753
      %vm755 = vcmp.eq.s32.totalorder %v709, 1
      %vm756 = vcmp.eq.s32.totalorder %v712, 1
      %vm757 = vcmp.eq.s32.totalorder %v715, 1
      %vm758 = vcmp.eq.s32.totalorder %v718, 1
      %vm759 = vcmp.eq.s32.totalorder %v721, 1
      %vm760 = vcmp.eq.s32.totalorder %v724, 1
      %vm761 = vcmp.eq.s32.totalorder %v727, 1
      %vm762 = vcmp.eq.s32.totalorder %v730, 1
      %vm763 = vcmp.eq.s32.totalorder %v733, 1
      %vm764 = vcmp.eq.s32.totalorder %v736, 1
      %vm765 = vcmp.eq.s32.totalorder %v739, 1
      %vm766 = vcmp.eq.s32.totalorder %v742, 1
      %vm767 = vcmp.eq.s32.totalorder %v745, 1
      %vm768 = vcmp.eq.s32.totalorder %v748, 1
      %vm769 = vcmp.eq.s32.totalorder %v751, 1
      %vm770 = vcmp.eq.s32.totalorder %v754, 1
      %v771 = vsel %vm755, %v644, 0.0
      %v772 = vsel %vm756, %v646, 0.0
      %v773 = vsel %vm757, %v648, 0.0
      %v774 = vsel %vm758, %v650, 0.0
      %v775 = vsel %vm759, %v652, 0.0
      %v776 = vsel %vm760, %v654, 0.0
      %v777 = vsel %vm761, %v656, 0.0
      %v778 = vsel %vm762, %v658, 0.0
      %v779 = vsel %vm763, %v660, 0.0
      %v780 = vsel %vm764, %v662, 0.0
      %v781 = vsel %vm765, %v664, 0.0
      %v782 = vsel %vm766, %v666, 0.0
      %v783 = vsel %vm767, %v668, 0.0
      %v784 = vsel %vm768, %v670, 0.0
      %v785 = vsel %vm769, %v672, 0.0
      %v786 = vsel %vm770, %v674, 0.0
      %787 = vst [vmem:[#allocation11] sm:$0xff] %v771
      %788 = vst [vmem:[#allocation11 + $0x8] sm:$0xff] %v772
      %789 = vst [vmem:[#allocation11 + $0x10] sm:$0xff] %v773
      %790 = vst [vmem:[#allocation11 + $0x18] sm:$0xff] %v774
      %791 = vst [vmem:[#allocation11 + $0x20] sm:$0xff] %v775
      %792 = vst [vmem:[#allocation11 + $0x28] sm:$0xff] %v776
      %793 = vst [vmem:[#allocation11 + $0x30] sm:$0xff] %v777
      %794 = vst [vmem:[#allocation11 + $0x38] sm:$0xff] %v778
      %795 = vst [vmem:[#allocation11 + $0x40] sm:$0xff] %v779
      %796 = vst [vmem:[#allocation11 + $0x48] sm:$0xff] %v780
      %797 = vst [vmem:[#allocation11 + $0x50] sm:$0xff] %v781
      %798 = vst [vmem:[#allocation11 + $0x58] sm:$0xff] %v782
      %799 = vst [vmem:[#allocation11 + $0x60] sm:$0xff] %v783
      %800 = vst [vmem:[#allocation11 + $0x68] sm:$0xff] %v784
      %801 = vst [vmem:[#allocation11 + $0x70] sm:$0xff] %v785
      %802 = vst [vmem:[#allocation11 + $0x78] sm:$0xff] %v786
    $region29: #{tpu_custom_call.1} parent=1 // pred_fallthru
      _
    // Predicated region
    $region30: #{tpu_custom_call.1} parent=1 // pred_check
      _
    $region31: #{tpu_custom_call.1} parent=1 // pred_check_branch
      %804 = sbr.rel (0) target = $region33
    $region32: #{tpu_custom_call.1} parent=1 // pred_region
      %s806 = ssub.s32 2048, 2048
      %807 = vsyncadd [#allocation8], %s806
      %s808 = sshll.u32 [#allocation11], 4
      %s809 = int_to_ptr.vmem [resolvable:$true] %s808
      %814 = dma.vmem_to_hbm [thread:$0]  %s809, 2048, %s3, [#allocation8], 128, 128, 8
    $region33: #{tpu_custom_call.1} parent=1 // pred_fallthru
      _
    // Predicated region
    $region34: #{tpu_custom_call.1} parent=1 // pred_check
      _
    $region35: #{tpu_custom_call.1} parent=1 // pred_check_branch
      %816 = sbr.rel (0) target = $region37
    $region36: #{tpu_custom_call.1} parent=1 // pred_region
      %817 = dma.done [#allocation8], 2048
    $region37: #{tpu_custom_call.1} parent=1 // pred_fallthru
      _
    %818 = vsyncpa [#allocation7], 1
    %819 = vsyncpa [#allocation10], 1
    %820 = vsyncpa [#allocation8], 1

</llo_original>
